<compile_context>
chip_gen: v7x
topology: tpu7x:2x2x1
jax: 0.10.0
libtpu: 0.0.40
codegen_flags: <defaults>
</compile_context>

<pallas_src>
import functools

import jax
import jax.numpy as jnp
from jax.experimental import pallas as pl
from jax.experimental.pallas import tpu as pltpu


# Scoped VMEM limit: conservative enough for v7x's 64 MiB physical VMEM and an
# explicit override so v5e does not fall back to its 16 MiB default.
_VMEM_LIMIT_BYTES = 48 * 1024 * 1024
# Budget for the double-buffered per-step working set when choosing tn.
_TILE_BUDGET_BYTES = 24 * 1024 * 1024


# ----------------------------------------------------------------------------- kernel


def lstm_cell_kernel(xh_ref, c_ref, w_ref, b_ref, h_out_ref, c_out_ref, *, tn):
    """One hidden-column tile of an LSTM cell step.

    xh_ref : (B, K)       [x_t | h_tm1], matmul dtype (bf16)
    c_ref  : (B, tn)      slice of previous cell state, f32
    w_ref  : (K, 4*tn)    fused weight tile, columns = [f | g | i | o], bf16
    b_ref  : (1, 4*tn)    pre-summed biases, same gate layout, f32
    """
    xh = xh_ref[...]                     # bf16 -> straight to the MXU
    c = c_ref[...]                       # f32

    # Single MXU matmul for all four gates of this tile, f32 accumulation,
    # followed by one lane-dense bias add.
    z = jnp.dot(xh, w_ref[...], preferred_element_type=jnp.float32) + b_ref[...]

    # tn is a multiple of 128 -> lane-aligned slices, pure vreg selects.
    zf = z[:, 0 * tn:1 * tn]
    zg = z[:, 1 * tn:2 * tn]
    zi = z[:, 2 * tn:3 * tn]
    zo = z[:, 3 * tn:4 * tn]

    f_t = jax.nn.sigmoid(zf)
    g_t = jnp.tanh(zg)
    i_t = jax.nn.sigmoid(zi)
    o_t = jax.nn.sigmoid(zo)

    c_t = f_t * c + i_t * g_t
    h_t = o_t * jnp.tanh(c_t)

    h_out_ref[...] = h_t.astype(h_out_ref.dtype)
    c_out_ref[...] = c_t                 # cell state stays float32


# --------------------------------------------------------------------------- packing


def _round_up(x, m):
    return ((x + m - 1) // m) * m


def _choose_tile_n(K, H, B, w_itemsize, h_itemsize,
                   budget_bytes=_TILE_BUDGET_BYTES):
    """Pick the hidden tile width tn (a multiple of 128).

    The budget counts every double-buffered VMEM block of the pipeline
    (fused weight tile, xh, c tile, bias tile, h and c output tiles).
    When the 128-padded hidden dim is >= 256, at least two grid steps are kept
    so the "parallel" axis can be split across v7x's two TensorCores.
    """
    H128 = _round_up(H, 128)
    max_tn = H128 if H128 < 256 else _round_up(H128 // 2, 128)
    tn = 128
    for cand in range(max_tn, 127, -128):
        vmem = 2 * (K * 4 * cand * w_itemsize     # fused weight tile
                    + B * K * w_itemsize          # xh (resident block, 2 bufs)
                    + B * cand * 4                # c_tm1 tile (f32)
                    + 4 * cand * 4                # bias tile (f32)
                    + B * cand * h_itemsize       # h output tile
                    + B * cand * 4)               # c output tile (f32)
        if vmem <= budget_bytes:
            tn = cand
            break
    return tn


def pack_params(params, wdtype=jnp.bfloat16, batch_hint=8,
                budget_bytes=_TILE_BUDGET_BYTES):
    """One-time packing of nn.Linear-style parameters for the fused kernel.

    Per gate n in {f,g,i,o}: [Wx_n.T ; Wh_n.T] -> (K, Hp) slab (K = D_in + H,
    Hp = H padded to a multiple of the chosen tile tn).  The four slabs are then
    interleaved tile-major into one (K, 4*Hp) array: columns of tile j are
    [f_j | g_j | i_j | o_j], each tn wide.  Biases are pre-summed (bx + bh) and
    packed into one (1, 4*Hp) f32 row with the same layout.
    """
    H, D_in = params["Wx_f"].shape
    K = D_in + H
    tn = _choose_tile_n(K, H, batch_hint, jnp.dtype(wdtype).itemsize, 4,
                        budget_bytes)
    Hp = _round_up(_round_up(H, 128), tn)
    gates = ("f", "g", "i", "o")

    slabs, biases = [], []
    for n in gates:
        w = jnp.concatenate([params[f"Wx_{n}"].T, params[f"Wh_{n}"].T], axis=0)
        slabs.append(jnp.pad(w, ((0, 0), (0, Hp - H))).astype(wdtype))
        b = params[f"bx_{n}"] + params[f"bh_{n}"]
        biases.append(jnp.pad(b, (0, Hp - H)).astype(jnp.float32))

    n_tiles = Hp // tn
    w_tiles, b_tiles = [], []
    for j in range(n_tiles):
        sl = slice(j * tn, (j + 1) * tn)
        w_tiles.append(jnp.concatenate([s[:, sl] for s in slabs], axis=1))
        b_tiles.append(jnp.concatenate([b[sl] for b in biases], axis=0))

    W = jnp.concatenate(w_tiles, axis=1)                 # (K, 4*Hp)
    b = jnp.concatenate(b_tiles, axis=0)[None, :]        # (1, 4*Hp)
    return {"W": W, "b": b, "tn": tn, "Hp": Hp, "H": H, "D_in": D_in}


# --------------------------------------------------------------------------- wrapper


def lstm_cell(x_t, state_tm1, packed):
    """Pallas-backed LSTMCell forward. Mirrors the PyTorch module semantics."""
    h_tm1, c_tm1 = state_tm1
    B, D_in = x_t.shape
    H = h_tm1.shape[1]

    W, b = packed["W"], packed["b"]
    tn, Hp = packed["tn"], packed["Hp"]
    K = W.shape[0]
    assert K == D_in + H, "packed weights do not match input/hidden dims"
    assert W.shape[1] == 4 * Hp

    wdtype = W.dtype
    # Tiny per-step op: fuse the two matmul operands into one bf16 slab.
    xh = jnp.concatenate([x_t, h_tm1], axis=1).astype(wdtype)           # (B, K)
    c_pad = c_tm1.astype(jnp.float32)
    if Hp != H:
        c_pad = jnp.pad(c_pad, ((0, 0), (0, Hp - H)))                   # (B, Hp)

    grid = (Hp // tn,)
    kernel = functools.partial(lstm_cell_kernel, tn=tn)

    h_pad, c_new = pl.pallas_call(
        kernel,
        out_shape=(jax.ShapeDtypeStruct((B, Hp), x_t.dtype),
                   jax.ShapeDtypeStruct((B, Hp), jnp.float32)),
        grid_spec=pltpu.PrefetchScalarGridSpec(
            num_scalar_prefetch=0,
            grid=grid,
            in_specs=[
                pl.BlockSpec((B, K), lambda j: (0, 0)),          # xh (resident)
                pl.BlockSpec((B, tn), lambda j: (0, j)),         # c_tm1 tile
                pl.BlockSpec((K, 4 * tn), lambda j: (0, j)),     # fused weights
                pl.BlockSpec((1, 4 * tn), lambda j: (0, j)),     # fused biases
            ],
            out_specs=[
                pl.BlockSpec((B, tn), lambda j: (0, j)),         # h_t
                pl.BlockSpec((B, tn), lambda j: (0, j)),         # c_t (f32)
            ],
        ),
        compiler_params=pltpu.CompilerParams(
            dimension_semantics=("parallel",),
            vmem_limit_bytes=_VMEM_LIMIT_BYTES),
    )(xh, c_pad, W, b)

    if Hp != H:
        h_pad = h_pad[:, :H]
        c_new = c_new[:, :H]
    return h_pad, c_new.astype(c_tm1.dtype)


# -------------------------------------------------------------------- params & checks


def init_params(key, input_dim, hidden_dim, dtype=jnp.float32):
    """Deterministic init mimicking nn.Linear's U(-1/sqrt(fan_in), 1/sqrt(fan_in))."""
    names = ["f", "g", "i", "o"]
    params = {}
    keys = jax.random.split(key, 4 * 4)
    ki = 0
    bound_x = 1.0 / (input_dim ** 0.5)
    bound_h = 1.0 / (hidden_dim ** 0.5)
    for n in names:
        params[f"Wx_{n}"] = jax.random.uniform(
            keys[ki], (hidden_dim, input_dim), dtype, -bound_x, bound_x); ki += 1
        params[f"bx_{n}"] = jax.random.uniform(
            keys[ki], (hidden_dim,), dtype, -bound_x, bound_x); ki += 1
        params[f"Wh_{n}"] = jax.random.uniform(
            keys[ki], (hidden_dim, hidden_dim), dtype, -bound_h, bound_h); ki += 1
        params[f"bh_{n}"] = jax.random.uniform(
            keys[ki], (hidden_dim,), dtype, -bound_h, bound_h); ki += 1
    return params


def lstm_cell_ref(x_t, state_tm1, params):
    """Pure-JAX f32 reference matching the PyTorch forward exactly."""
    h, c = state_tm1
    lin = lambda x, W, b: x @ W.T + b
    f_t = jax.nn.sigmoid(lin(x_t, params["Wx_f"], params["bx_f"])
                         + lin(h, params["Wh_f"], params["bh_f"]))
    g_t = jnp.tanh(lin(x_t, params["Wx_g"], params["bx_g"])
                   + lin(h, params["Wh_g"], params["bh_g"]))
    i_t = jax.nn.sigmoid(lin(x_t, params["Wx_i"], params["bx_i"])
                         + lin(h, params["Wh_i"], params["bh_i"]))
    c_t = f_t * c + i_t * g_t
    o_t = jax.nn.sigmoid(lin(x_t, params["Wx_o"], params["bx_o"])
                         + lin(h, params["Wh_o"], params["bh_o"]))
    h_t = o_t * jnp.tanh(c_t)
    return h_t, c_t


def lstm_cell_ref_quantized(x_t, state_tm1, params):
    """Reference using the same bf16-rounded weights/activations as the kernel."""
    h, c = state_tm1
    q = lambda a: a.astype(jnp.bfloat16).astype(jnp.float32)
    xq, hq = q(x_t), q(h)

    def z(n):
        return (xq @ q(params[f"Wx_{n}"]).T + hq @ q(params[f"Wh_{n}"]).T
                + params[f"bx_{n}"] + params[f"bh_{n}"])

    f_t = jax.nn.sigmoid(z("f"))
    g_t = jnp.tanh(z("g"))
    i_t = jax.nn.sigmoid(z("i"))
    c_t = f_t * c + i_t * g_t
    o_t = jax.nn.sigmoid(z("o"))
    h_t = o_t * jnp.tanh(c_t)
    return h_t, c_t


if __name__ == "__main__":
    B, input_dim, hidden_dim = 8, 32, 32

    key = jax.random.PRNGKey(0)
    k_p, k_x, k_h, k_c = jax.random.split(key, 4)
    params = init_params(k_p, input_dim, hidden_dim)
    packed = pack_params(params, batch_hint=B)   # one-time fused bf16 packing

    x_t = jax.random.normal(k_x, (B, input_dim), jnp.float32)
    h_tm1 = jax.random.normal(k_h, (B, hidden_dim), jnp.float32)
    c_tm1 = jax.random.normal(k_c, (B, hidden_dim), jnp.float32)

    h_t, c_t = lstm_cell(x_t, (h_tm1, c_tm1), packed)
    jax.block_until_ready((h_t, c_t))

    # Tight check vs a reference that uses identical bf16-rounded operands.
    h_q, c_q = lstm_cell_ref_quantized(x_t, (h_tm1, c_tm1), params)
    assert jnp.allclose(h_t, h_q, atol=2e-3, rtol=2e-3)
    assert jnp.allclose(c_t, c_q, atol=2e-3, rtol=2e-3)

    # Loose check vs the pure-f32 PyTorch-equivalent reference (bf16 weight rounding).
    h_ref, c_ref = lstm_cell_ref(x_t, (h_tm1, c_tm1), params)
    assert jnp.allclose(h_t, h_ref, atol=3e-2, rtol=3e-2)
    assert jnp.allclose(c_t, c_ref, atol=3e-2, rtol=3e-2)

    print("KERNEL_OK")
</pallas_src>

<mosaic_0001>
module attributes {stable_mosaic.version = 11 : i64} {
  func.func @lstm_cell_kernel(%arg0: i32, %arg1: memref<8x64xbf16, #tpu.memory_space<vmem>>, %arg2: memref<8x128xf32, #tpu.memory_space<vmem>>, %arg3: memref<64x512xbf16, #tpu.memory_space<vmem>>, %arg4: memref<1x512xf32, #tpu.memory_space<vmem>>, %arg5: memref<8x128xf32, #tpu.memory_space<vmem>>, %arg6: memref<8x128xf32, #tpu.memory_space<vmem>>) attributes {dimension_semantics = [#tpu.dimension_semantics<parallel>], iteration_bounds = array<i64: 1>, scalar_prefetch = 0 : i64, scratch_operands = 0 : i64, tpu.core_type = #tpu.core_type<tc>, window_params = [{pipeline_mode = #tpu.pipeline_mode<synchronous>, transform_indices = @transform_0, window_bounds = array<i64: 8, 64>}, {transform_indices = @transform_1, window_bounds = array<i64: 8, 128>}, {transform_indices = @transform_2, window_bounds = array<i64: 64, 512>}, {transform_indices = @transform_3, window_bounds = array<i64: 1, 512>}, {transform_indices = @transform_4, window_bounds = array<i64: 8, 128>}, {transform_indices = @transform_5, window_bounds = array<i64: 8, 128>}]} {
    %c0 = arith.constant 0 : index
    %c0_0 = arith.constant 0 : index
    %0 = vector.load %arg1[%c0, %c0_0] : memref<8x64xbf16, #tpu.memory_space<vmem>>, vector<8x64xbf16>
    %c0_1 = arith.constant 0 : index
    %c0_2 = arith.constant 0 : index
    %1 = vector.load %arg2[%c0_1, %c0_2] : memref<8x128xf32, #tpu.memory_space<vmem>>, vector<8x128xf32>
    %c0_3 = arith.constant 0 : index
    %c0_4 = arith.constant 0 : index
    %2 = vector.load %arg3[%c0_3, %c0_4] : memref<64x512xbf16, #tpu.memory_space<vmem>>, vector<64x512xbf16>
    %cst = arith.constant dense<0.000000e+00> : vector<8x512xf32>
    %3 = tpu.matmul %0, %2, %cst {dimension_numbers = #tpu.dot_dimension_numbers<[1], [0], [0], [1], [0, 0, 1, 1], [], []>} : vector<8x64xbf16>, vector<64x512xbf16>, vector<8x512xf32> -> vector<8x512xf32>
    %c0_5 = arith.constant 0 : index
    %c0_6 = arith.constant 0 : index
    %4 = vector.load %arg4[%c0_5, %c0_6] : memref<1x512xf32, #tpu.memory_space<vmem>>, vector<1x512xf32>
    %5 = vector.broadcast %4 : vector<1x512xf32> to vector<8x512xf32>
    %6 = arith.addf %3, %5 : vector<8x512xf32>
    %7 = vector.extract_strided_slice %6 {offsets = [0, 0], sizes = [8, 128], strides = [1, 1]} : vector<8x512xf32> to vector<8x128xf32>
    %8 = vector.extract_strided_slice %6 {offsets = [0, 128], sizes = [8, 128], strides = [1, 1]} : vector<8x512xf32> to vector<8x128xf32>
    %9 = vector.extract_strided_slice %6 {offsets = [0, 256], sizes = [8, 128], strides = [1, 1]} : vector<8x512xf32> to vector<8x128xf32>
    %10 = vector.extract_strided_slice %6 {offsets = [0, 384], sizes = [8, 128], strides = [1, 1]} : vector<8x512xf32> to vector<8x128xf32>
    %11 = arith.negf %7 : vector<8x128xf32>
    %12 = math.exp %11 : vector<8x128xf32>
    %cst_7 = arith.constant 1.000000e+00 : f32
    %13 = vector.broadcast %cst_7 : f32 to vector<8x128xf32>
    %14 = arith.addf %13, %12 : vector<8x128xf32>
    %15 = arith.divf %13, %14 : vector<8x128xf32>
    %16 = math.tanh %8 : vector<8x128xf32>
    %17 = arith.negf %9 : vector<8x128xf32>
    %18 = math.exp %17 : vector<8x128xf32>
    %cst_8 = arith.constant 1.000000e+00 : f32
    %19 = vector.broadcast %cst_8 : f32 to vector<8x128xf32>
    %20 = arith.addf %19, %18 : vector<8x128xf32>
    %21 = arith.divf %19, %20 : vector<8x128xf32>
    %22 = arith.negf %10 : vector<8x128xf32>
    %23 = math.exp %22 : vector<8x128xf32>
    %cst_9 = arith.constant 1.000000e+00 : f32
    %24 = vector.broadcast %cst_9 : f32 to vector<8x128xf32>
    %25 = arith.addf %24, %23 : vector<8x128xf32>
    %26 = arith.divf %24, %25 : vector<8x128xf32>
    %27 = arith.mulf %15, %1 : vector<8x128xf32>
    %28 = arith.mulf %21, %16 : vector<8x128xf32>
    %29 = arith.addf %27, %28 : vector<8x128xf32>
    %30 = math.tanh %29 : vector<8x128xf32>
    %31 = arith.mulf %26, %30 : vector<8x128xf32>
    %c0_10 = arith.constant 0 : index
    %c0_11 = arith.constant 0 : index
    %32 = vector.load %arg5[%c0_10, %c0_11] : memref<8x128xf32, #tpu.memory_space<vmem>>, vector<8x128xf32>
    tpu.vector_store %arg5[%c0_10, %c0_11], %31 {strides = array<i32>} : memref<8x128xf32, #tpu.memory_space<vmem>>, vector<8x128xf32>,
    %c0_12 = arith.constant 0 : index
    %c0_13 = arith.constant 0 : index
    %33 = vector.load %arg6[%c0_12, %c0_13] : memref<8x128xf32, #tpu.memory_space<vmem>>, vector<8x128xf32>
    tpu.vector_store %arg6[%c0_12, %c0_13], %29 {strides = array<i32>} : memref<8x128xf32, #tpu.memory_space<vmem>>, vector<8x128xf32>,
    return
  }
  func.func @transform_0(%arg0: i32) -> (i32, i32) {
    %c0_i32 = arith.constant 0 : i32
    %c0_i32_0 = arith.constant 0 : i32
    %c0_i32_1 = arith.constant 0 : i32
    return %c0_i32, %c0_i32_0 : i32, i32
  }
  func.func @transform_1(%arg0: i32) -> (i32, i32) {
    %c0_i32 = arith.constant 0 : i32
    %c0_i32_0 = arith.constant 0 : i32
    return %c0_i32, %arg0 : i32, i32
  }
  func.func @transform_2(%arg0: i32) -> (i32, i32) {
    %c0_i32 = arith.constant 0 : i32
    %c0_i32_0 = arith.constant 0 : i32
    return %c0_i32, %arg0 : i32, i32
  }
  func.func @transform_3(%arg0: i32) -> (i32, i32) {
    %c0_i32 = arith.constant 0 : i32
    %c0_i32_0 = arith.constant 0 : i32
    return %c0_i32, %arg0 : i32, i32
  }
  func.func @transform_4(%arg0: i32) -> (i32, i32) {
    %c0_i32 = arith.constant 0 : i32
    %c0_i32_0 = arith.constant 0 : i32
    return %c0_i32, %arg0 : i32, i32
  }
  func.func @transform_5(%arg0: i32) -> (i32, i32) {
    %c0_i32 = arith.constant 0 : i32
    %c0_i32_0 = arith.constant 0 : i32
    return %c0_i32, %arg0 : i32, i32
  }
}

</mosaic_0001>

<llo_original>
// kernel: tpu_custom_call.1
$region0: #{tpu_custom_call.1}
  #allocation0 [shape = 'u32[]', space=smem, size = 0x4, offset = 0x4, fixed_abs, tag = 'smem constant byte address 0x4 - core index']
  #allocation1 [shape = 'u32[144,128]{1,0:T(1,128)}', space=vmem, size = 0x12000, scoped, tag = 'internal scratch']
  %s0 = inlined_call_operand.hbm [shape: bf16[8,64], index: 0, kind: input, shape index: {}]
  %s1 = inlined_call_operand.hbm [shape: f32[8,128], index: 1, kind: input, shape index: {}]
  %s2 = inlined_call_operand.hbm [shape: bf16[64,512], index: 2, kind: input, shape index: {}]
  %s3 = inlined_call_operand.vmem [shape: f32[1,512], index: 3, kind: input, shape index: {}]
  %s4 = inlined_call_operand.hbm [shape: f32[8,128], index: 4, kind: output, shape index: {0}]
  %s5 = inlined_call_operand.hbm [shape: f32[8,128], index: 5, kind: output, shape index: {1}]
  %6 = xla_tuple %s4, %s5
  %s7 = sld [smem:[#allocation0]]
  $region46: #{tpu_custom_call.1} parent=0
    _
  %s9 = ssub.s32 1, %s7
  %s10 = scalar_select 0, %s9, %s7
  $region1: #{tpu_custom_call.1} parent=0
    #allocation2 [shape = 'u8[2048]{0}', space=vmem, size = 0x800, scoped, tag = 'input window, operand 0, single buffered']
    #allocation3 [shape = 's32[1]{0}', space=sflag, size = 0x4, scoped, tag = 'scoped memory for tpu_custom_call.1']
    #allocation4 [shape = 's32[1]{0}', space=sflag, size = 0x4, scoped, tag = 'scoped memory for tpu_custom_call.1']
    #allocation5 [shape = 'u8[4096]{0}', space=vmem, size = 0x1000, scoped, tag = 'input window, operand 1, single buffered']
    #allocation6 [shape = 's32[1]{0}', space=sflag, size = 0x4, scoped, tag = 'scoped memory for tpu_custom_call.1']
    #allocation7 [shape = 'u8[65536]{0}', space=vmem, size = 0x10000, scoped, tag = 'input window, operand 2, single buffered']
    #allocation8 [shape = 'u8[4096]{0}', space=vmem, size = 0x1000, scoped, tag = 'output window, operand 0, single buffered']
    #allocation9 [shape = 'u8[4096]{0}', space=vmem, size = 0x1000, scoped, tag = 'output window, operand 1, single buffered']
    #allocation10 [shape = 's32[1]{0}', space=sflag, size = 0x4, scoped, tag = 'scoped memory for tpu_custom_call.1']
    %11 = vsyncpa [#allocation3], 0
    %12 = vsyncpa [#allocation6], 0
    %13 = vsyncpa [#allocation4], 0
    %14 = vsyncpa [#allocation10], 0
    // Predicated region
    $region2: #{tpu_custom_call.1} parent=1 // pred_check
      _
    $region3: #{tpu_custom_call.1} parent=1 // pred_check_branch
      %16 = sbr.rel (0) target = $region5
    $region4: #{tpu_custom_call.1} parent=1 // pred_region
      %s18 = ssub.s32 64, 64
      %19 = vsyncadd [#allocation3], %s18
      %s21 = sshll.u32 [#allocation2], 4
      %s22 = int_to_ptr.vmem [resolvable:$true] %s21
      %24 = dma.hbm_to_vmem [thread:$0]  %s0, 64, %s22, [#allocation3]
    $region5: #{tpu_custom_call.1} parent=1 // pred_fallthru
      _
    // Predicated region
    $region6: #{tpu_custom_call.1} parent=1 // pred_check
      _
    $region7: #{tpu_custom_call.1} parent=1 // pred_check_branch
      %26 = sbr.rel (0) target = $region9
    $region8: #{tpu_custom_call.1} parent=1 // pred_region
      %s28 = ssub.s32 128, 128
      %29 = vsyncadd [#allocation6], %s28
      %s31 = sshll.u32 [#allocation5], 4
      %s32 = int_to_ptr.vmem [resolvable:$true] %s31
      %34 = dma.hbm_to_vmem [thread:$0]  %s1, 128, %s32, [#allocation6]
    $region9: #{tpu_custom_call.1} parent=1 // pred_fallthru
      _
    // Predicated region
    $region10: #{tpu_custom_call.1} parent=1 // pred_check
      _
    $region11: #{tpu_custom_call.1} parent=1 // pred_check_branch
      %36 = sbr.rel (0) target = $region13
    $region12: #{tpu_custom_call.1} parent=1 // pred_region
      %s38 = ssub.s32 2048, 2048
      %39 = vsyncadd [#allocation6], %s38
      %s40 = sshll.u32 [#allocation7], 4
      %s41 = int_to_ptr.vmem [resolvable:$true] %s40
      %46 = dma.hbm_to_vmem [thread:$0]  %s2, 2048, %s41, [#allocation6], 256, 256, 16
    $region13: #{tpu_custom_call.1} parent=1 // pred_fallthru
      _
    // Predicated region
    $region14: #{tpu_custom_call.1} parent=1 // pred_check
      _
    $region15: #{tpu_custom_call.1} parent=1 // pred_check_branch
      %48 = sbr.rel (0) target = $region17
    $region16: #{tpu_custom_call.1} parent=1 // pred_region
      _
    $region17: #{tpu_custom_call.1} parent=1 // pred_fallthru
      _
    // Predicated region
    $region18: #{tpu_custom_call.1} parent=1 // pred_check
      _
    $region19: #{tpu_custom_call.1} parent=1 // pred_check_branch
      %50 = sbr.rel (0) target = $region21
    $region20: #{tpu_custom_call.1} parent=1 // pred_region
      %51 = dma.done [#allocation3], 64
    $region21: #{tpu_custom_call.1} parent=1 // pred_fallthru
      _
    // Predicated region
    $region22: #{tpu_custom_call.1} parent=1 // pred_check
      _
    $region23: #{tpu_custom_call.1} parent=1 // pred_check_branch
      %53 = sbr.rel (0) target = $region25
    $region24: #{tpu_custom_call.1} parent=1 // pred_region
      %54 = dma.done [#allocation6], 128
    $region25: #{tpu_custom_call.1} parent=1 // pred_fallthru
      _
    // Predicated region
    $region26: #{tpu_custom_call.1} parent=1 // pred_check
      _
    $region27: #{tpu_custom_call.1} parent=1 // pred_check_branch
      %56 = sbr.rel (0) target = $region29
    $region28: #{tpu_custom_call.1} parent=1 // pred_region
      %57 = dma.done [#allocation6], 2048
    $region29: #{tpu_custom_call.1} parent=1 // pred_fallthru
      _
    %v59 = vld [vmem:[#allocation2] sm:$0xf]
    %v60 = vld [vmem:[#allocation5] sm:$0xff]
    %v61 = vld [vmem:[#allocation7] sm:$0xff]
    %v62 = vld [vmem:[#allocation7 + $0x8] sm:$0xff]
    %v63 = vld [vmem:[#allocation7 + $0x10] sm:$0xff]
    %v64 = vld [vmem:[#allocation7 + $0x18] sm:$0xff]
    %v65 = vld [vmem:[#allocation7 + $0x20] sm:$0xff]
    %v66 = vld [vmem:[#allocation7 + $0x28] sm:$0xff]
    %v67 = vld [vmem:[#allocation7 + $0x30] sm:$0xff]
    %v68 = vld [vmem:[#allocation7 + $0x38] sm:$0xff]
    %v69 = vld [vmem:[#allocation7 + $0x40] sm:$0xff]
    %v70 = vld [vmem:[#allocation7 + $0x48] sm:$0xff]
    %v71 = vld [vmem:[#allocation7 + $0x50] sm:$0xff]
    %v72 = vld [vmem:[#allocation7 + $0x58] sm:$0xff]
    %v73 = vld [vmem:[#allocation7 + $0x60] sm:$0xff]
    %v74 = vld [vmem:[#allocation7 + $0x68] sm:$0xff]
    %v75 = vld [vmem:[#allocation7 + $0x70] sm:$0xff]
    %v76 = vld [vmem:[#allocation7 + $0x78] sm:$0xff]
    %v77 = vld [vmem:[%s3] sm:$0xf]
    %v79 = vlaneseq
    %v80 = vshrl.u32 %v79, 7
    %v81 = vsub.s32 0, %v80
    %v82 = vrot.slane %v77, %v81
    %v83 = vlaneseq
    %v84 = vshrl.u32 %v83, 7
    %v85 = vsub.s32 1, %v84
    %v86 = vrot.slane %v77, %v85
    %v87 = vlaneseq
    %v88 = vshrl.u32 %v87, 7
    %v89 = vsub.s32 2, %v88
    %v90 = vrot.slane %v77, %v89
    %v91 = vlaneseq
    %v92 = vshrl.u32 %v91, 7
    %v93 = vsub.s32 3, %v92
    %v94 = vrot.slane %v77, %v93
    %v115 = vunpack.c.l.b16 %v61
    %v116 = vunpack.c.h.b16 %v61
    %v117 = vunpack.c.l.b16 %v62
    %v118 = vunpack.c.h.b16 %v62
    %v119 = vunpack.c.l.b16 %v63
    %v120 = vunpack.c.h.b16 %v63
    %v121 = vunpack.c.l.b16 %v64
    %v122 = vunpack.c.h.b16 %v64
    %v123 = vunpack.c.l.b16 %v65
    %v124 = vunpack.c.h.b16 %v65
    %v125 = vunpack.c.l.b16 %v66
    %v126 = vunpack.c.h.b16 %v66
    %v127 = vunpack.c.l.b16 %v67
    %v128 = vunpack.c.h.b16 %v67
    %v129 = vunpack.c.l.b16 %v68
    %v130 = vunpack.c.h.b16 %v68
    %v131 = vunpack.c.l.b16 %v69
    %v132 = vunpack.c.h.b16 %v69
    %v133 = vunpack.c.l.b16 %v70
    %v134 = vunpack.c.h.b16 %v70
    %v135 = vunpack.c.l.b16 %v71
    %v136 = vunpack.c.h.b16 %v71
    %v137 = vunpack.c.l.b16 %v72
    %v138 = vunpack.c.h.b16 %v72
    %v139 = vunpack.c.l.b16 %v73
    %v140 = vunpack.c.h.b16 %v73
    %v141 = vunpack.c.l.b16 %v74
    %v142 = vunpack.c.h.b16 %v74
    %v143 = vunpack.c.l.b16 %v75
    %v144 = vunpack.c.h.b16 %v75
    %v145 = vunpack.c.l.b16 %v76
    %v146 = vunpack.c.h.b16 %v76
    %v147 = vpack.c.b16 %v119, %v115
    %v148 = vpack.c.b16 %v120, %v116
    %v149 = vpack.c.b16 %v121, %v117
    %v150 = vpack.c.b16 %v122, %v118
    %v151 = vpack.c.b16 %v127, %v123
    %v152 = vpack.c.b16 %v128, %v124
    %v153 = vpack.c.b16 %v129, %v125
    %v154 = vpack.c.b16 %v130, %v126
    %v155 = vpack.c.b16 %v135, %v131
    %v156 = vpack.c.b16 %v136, %v132
    %v157 = vpack.c.b16 %v137, %v133
    %v158 = vpack.c.b16 %v138, %v134
    %v159 = vpack.c.b16 %v143, %v139
    %v160 = vpack.c.b16 %v144, %v140
    %v161 = vpack.c.b16 %v145, %v141
    %v162 = vpack.c.b16 %v146, %v142
    %vm179 = vcmask 523264
    %v181 = vsel %vm179, %v59, 0
    %183 = vmatprep.subr.bf16.mxu0 %v148
    %184 = vmatpush1.bf16.msra.mxu0 %v147
    %185 = vmatprep.subr.bf16.mxu0 %v152
    %186 = vmatpush1.bf16.msra.mxu0 %v151
    %187 = vmatprep.subr.bf16.mxu0 %v156
    %188 = vmatpush1.bf16.msra.mxu0 %v155
    %189 = vmatprep.subr.bf16.mxu0 %v160
    %190 = vmatpush1.bf16.msra.mxu0 %v159
    %191 = vmatprep.subr.bf16.mxu0 0
    %192 = vmatpush1.bf16.msra.mxu0 0
    %193 = vmatprep.subr.bf16.mxu0 0
    %194 = vmatpush1.bf16.msra.mxu0 0
    %195 = vmatprep.subr.bf16.mxu0 0
    %196 = vmatpush1.bf16.msra.mxu0 0
    %197 = vmatprep.subr.bf16.mxu0 0
    %198 = vmatpush1.bf16.msra.mxu0 0
    %199 = vmatprep.subr.bf16.mxu0 0
    %200 = vmatpush1.bf16.msra.mxu0 0
    %201 = vmatprep.subr.bf16.mxu0 0
    %202 = vmatpush1.bf16.msra.mxu0 0
    %203 = vmatprep.subr.bf16.mxu0 0
    %204 = vmatpush1.bf16.msra.mxu0 0
    %205 = vmatprep.subr.bf16.mxu0 0
    %206 = vmatpush1.bf16.msra.mxu0 0
    %207 = vmatprep.subr.bf16.mxu0 0
    %208 = vmatpush1.bf16.msra.mxu0 0
    %209 = vmatprep.subr.bf16.mxu0 0
    %210 = vmatpush1.bf16.msra.mxu0 0
    %211 = vmatprep.subr.bf16.mxu0 0
    %212 = vmatpush1.bf16.msra.mxu0 0
    %213 = vmatprep.subr.bf16.mxu0 0
    %214 = vmatpush1.bf16.msra.mxu0 0
    %215 = vmatprep.mubr.bf16.mxu0 0
    %216 = vmatmul.mubr.bf16.gmra.mrb[0].mxu0 %v181
    %v217 = vpop.f32.mrb[0].mxu0
    %v218 = vadd.f32 %v82, %v217
    %v219 = vpop.f32.mrb[0].mxu0
    %v220 = vadd.f32 %v86, %v219
    %v221 = vpop.f32.mrb[0].mxu0
    %v222 = vpop.f32.mrb[0].mxu0
    %223 = vdwg.mxu0
    %224 = vmatprep.subr.bf16.mxu0 %v150
    %225 = vmatpush1.bf16.msra.mxu0 %v149
    %226 = vmatprep.subr.bf16.mxu0 %v154
    %227 = vmatpush1.bf16.msra.mxu0 %v153
    %228 = vmatprep.subr.bf16.mxu0 %v158
    %229 = vmatpush1.bf16.msra.mxu0 %v157
    %230 = vmatprep.subr.bf16.mxu0 %v162
    %231 = vmatpush1.bf16.msra.mxu0 %v161
    %232 = vmatprep.subr.bf16.mxu0 0
    %233 = vmatpush1.bf16.msra.mxu0 0
    %234 = vmatprep.subr.bf16.mxu0 0
    %235 = vmatpush1.bf16.msra.mxu0 0
    %236 = vmatprep.subr.bf16.mxu0 0
    %237 = vmatpush1.bf16.msra.mxu0 0
    %238 = vmatprep.subr.bf16.mxu0 0
    %239 = vmatpush1.bf16.msra.mxu0 0
    %240 = vmatprep.subr.bf16.mxu0 0
    %241 = vmatpush1.bf16.msra.mxu0 0
    %242 = vmatprep.subr.bf16.mxu0 0
    %243 = vmatpush1.bf16.msra.mxu0 0
    %244 = vmatprep.subr.bf16.mxu0 0
    %245 = vmatpush1.bf16.msra.mxu0 0
    %246 = vmatprep.subr.bf16.mxu0 0
    %247 = vmatpush1.bf16.msra.mxu0 0
    %248 = vmatprep.subr.bf16.mxu0 0
    %249 = vmatpush1.bf16.msra.mxu0 0
    %250 = vmatprep.subr.bf16.mxu0 0
    %251 = vmatpush1.bf16.msra.mxu0 0
    %252 = vmatprep.subr.bf16.mxu0 0
    %253 = vmatpush1.bf16.msra.mxu0 0
    %254 = vmatprep.subr.bf16.mxu0 0
    %255 = vmatpush1.bf16.msra.mxu0 0
    %256 = vmatprep.mubr.bf16.mxu0 0
    %257 = vmatmul.mubr.bf16.gmra.mrb[0].mxu0 %v181
    %v258 = vpop.f32.mrb[0].mxu0
    %v259 = vadd.f32 %v90, %v258
    %v260 = vpop.f32.mrb[0].mxu0
    %v261 = vadd.f32 %v94, %v260
    %v262 = vpop.f32.mrb[0].mxu0
    %v263 = vpop.f32.mrb[0].mxu0
    %264 = vdwg.mxu0
    %v265 = vxor.u32 %v218, 2147483648
    %v266 = vmul.f32 %v265, 1.442695
    %v267 = vpow.pop %v266
    %v268 = vadd.f32 %v267, 1.0
    %v269 = vrcp.pop %v268
    %v270 = vmul.f32 1.0, %v269
    %v271 = vtanh.pop %v220
    %v272 = vxor.u32 %v259, 2147483648
    %v273 = vmul.f32 %v272, 1.442695
    %v274 = vpow.pop %v273
    %v275 = vadd.f32 %v274, 1.0
    %v276 = vrcp.pop %v275
    %v277 = vmul.f32 1.0, %v276
    %v278 = vxor.u32 %v261, 2147483648
    %v279 = vmul.f32 %v278, 1.442695
    %v280 = vpow.pop %v279
    %v281 = vadd.f32 %v280, 1.0
    %v282 = vrcp.pop %v281
    %v283 = vmul.f32 1.0, %v282
    %v284 = vmul.f32 %v270, %v60
    %v285 = vmul.f32 %v277, %v271
    %v286 = vadd.f32 %v284, %v285
    %v287 = vtanh.pop %v286
    %v288 = vmul.f32 %v283, %v287
    %289 = vst [vmem:[#allocation8] sm:$0xff] %v288
    %290 = vst [vmem:[#allocation9] sm:$0xff] %v286
    // Predicated region
    $region30: #{tpu_custom_call.1} parent=1 // pred_check
      _
    $region31: #{tpu_custom_call.1} parent=1 // pred_check_branch
      %292 = sbr.rel (0) target = $region33
    $region32: #{tpu_custom_call.1} parent=1 // pred_region
      %s294 = ssub.s32 128, 128
      %295 = vsyncadd [#allocation4], %s294
      %s297 = sshll.u32 [#allocation8], 4
      %s298 = int_to_ptr.vmem [resolvable:$true] %s297
      %300 = dma.vmem_to_hbm [thread:$0]  %s298, 128, %s4, [#allocation4]
    $region33: #{tpu_custom_call.1} parent=1 // pred_fallthru
      _
    // Predicated region
    $region34: #{tpu_custom_call.1} parent=1 // pred_check
      _
    $region35: #{tpu_custom_call.1} parent=1 // pred_check_branch
      %302 = sbr.rel (0) target = $region37
    $region36: #{tpu_custom_call.1} parent=1 // pred_region
      %s304 = ssub.s32 128, 128
      %305 = vsyncadd [#allocation10], %s304
      %s307 = sshll.u32 [#allocation9], 4
      %s308 = int_to_ptr.vmem [resolvable:$true] %s307
      %310 = dma.vmem_to_hbm [thread:$0]  %s308, 128, %s5, [#allocation10]
    $region37: #{tpu_custom_call.1} parent=1 // pred_fallthru
      _
    // Predicated region
    $region38: #{tpu_custom_call.1} parent=1 // pred_check
      _
    $region39: #{tpu_custom_call.1} parent=1 // pred_check_branch
      %312 = sbr.rel (0) target = $region41
    $region40: #{tpu_custom_call.1} parent=1 // pred_region
      %313 = dma.done [#allocation4], 128
    $region41: #{tpu_custom_call.1} parent=1 // pred_fallthru
      _
    // Predicated region
    $region42: #{tpu_custom_call.1} parent=1 // pred_check
      _
    $region43: #{tpu_custom_call.1} parent=1 // pred_check_branch
      %315 = sbr.rel (0) target = $region45
    $region44: #{tpu_custom_call.1} parent=1 // pred_region
      %316 = dma.done [#allocation10], 128
    $region45: #{tpu_custom_call.1} parent=1 // pred_fallthru
      _
    %317 = vsyncpa [#allocation3], 1
    %318 = vsyncpa [#allocation6], 1
    %319 = vsyncpa [#allocation4], 1
    %320 = vsyncpa [#allocation10], 1

</llo_original>
